<compile_context>
chip_gen: v5e
topology: v5e:2x2
jax: 0.10.0
libtpu: 0.0.40
codegen_flags: <defaults>
</compile_context>

<pallas_src>
import functools

import jax
import jax.numpy as jnp
from jax.experimental import pallas as pl
from jax.experimental.pallas import tpu as pltpu


def _attention_gate_kernel(g_ref, x_ref,
                           wgt_ref, wxt_ref, b_ref,
                           wp_ref, bp_ref,
                           o_ref):
    # g_ref / x_ref : (F_g, TP) / (F_l, TP)  channel-major pixel tile (in dtype)
    # wgt_ref       : (F_int, F_g)  bf16, BN-folded, pre-transposed Wg
    # wxt_ref       : (F_int, F_l)  bf16, BN-folded, pre-transposed Wx
    # b_ref         : (F_int, 1)    f32 combined folded bias (bg + bx)
    # wp_ref        : (F_int, 1)    f32 BN-folded psi weight column
    # bp_ref        : (1, 1)        f32 folded psi bias
    x_in = x_ref[...]
    # bf16 MXU datapath, f32 accumulation, single accumulator.
    a = jnp.dot(wgt_ref[...], g_ref[...].astype(jnp.bfloat16),
                preferred_element_type=jnp.float32)
    a += jnp.dot(wxt_ref[...], x_in.astype(jnp.bfloat16),
                 preferred_element_type=jnp.float32)
    a = jnp.maximum(a + b_ref[...], 0.0)                       # ReLU, (F_int, TP)
    # psi 1x1 conv has output width 1 -> sublane reduction instead of a 1-wide
    # MXU output (see header NOTE about the regime-dependent alternative).
    logits = jnp.sum(wp_ref[...] * a, axis=0, keepdims=True) + bp_ref[...]
    psi = jax.nn.sigmoid(logits)                                # (1, TP) f32
    if x_in.dtype == jnp.bfloat16:
        # Native bf16 VPU on v6e/v7x: skip the f32 up/down-cast round trip.
        o_ref[...] = (x_in * psi.astype(jnp.bfloat16)).astype(o_ref.dtype)
    else:
        o_ref[...] = (x_in.astype(jnp.float32) * psi).astype(o_ref.dtype)


def _fold_bn(w, b, gamma, beta, mean, var, eps=1e-5):
    """Fold eval-mode BatchNorm into a 1x1 conv. w: (C_in, C_out)."""
    s = gamma / jnp.sqrt(var + eps)                # (C_out,)
    w_f = w * s[None, :]
    b_f = (b - mean) * s + beta
    return w_f, b_f


def _vmem_limit_bytes():
    """Generation-aware scoped-VMEM limit: ~75% of physical VMEM.

    128 MiB physical on v5e/v6e -> ~96 MiB; 64 MiB on v7x -> ~48 MiB, leaving
    headroom for compiler-internal scratch and pipeline bookkeeping.
    """
    try:
        cap = int(pltpu.get_tpu_info().vmem_capacity_bytes)
    except Exception:  # pragma: no cover - conservative fallback
        cap = 128 << 20
    return cap * 3 // 4


@functools.partial(jax.jit, static_argnames=("tile_p",))
def attention_gate(g, x, params, tile_p=2048):
    """g: (N, F_g, H, W), x: (N, F_l, H, W)  ->  (N, F_l, H, W)."""
    N, F_g, H, W = g.shape
    _, F_l, _, _ = x.shape

    wg, bg = _fold_bn(params["wg"], params["bg"], params["gn_g_gamma"],
                      params["gn_g_beta"], params["gn_g_mean"],
                      params["gn_g_var"])
    wx, bx = _fold_bn(params["wx"], params["bx"], params["gn_x_gamma"],
                      params["gn_x_beta"], params["gn_x_mean"],
                      params["gn_x_var"])
    wp, bp = _fold_bn(params["wp"], params["bp"], params["gn_p_gamma"],
                      params["gn_p_beta"], params["gn_p_mean"],
                      params["gn_p_var"])
    F_int = wg.shape[1]
    HW = H * W

    # ---- choose a lane-aligned pixel tile that fits the VMEM budget --------
    vmem_limit = _vmem_limit_bytes()
    itemsize = jnp.dtype(x.dtype).itemsize
    # Per-pixel-column bytes: double-buffered g/x/out tiles, in-kernel bf16
    # copies of g/x, and the live f32 intermediates (a, gated product, psi).
    per_pixel = (2 * itemsize * (F_g + 2 * F_l)
                 + 2 * (F_g + F_l)
                 + 4 * (F_int + F_l + 4))
    # Hand ~80% of the scoped limit to the pipelined tiles.
    max_tp = max(128, ((vmem_limit * 4 // 5) // per_pixel) // 128 * 128)
    tp = min(int(tile_p), max_tp)
    if N == 1 and HW > 256:
        # v7x has 2 TensorCores per chip: keep >= 2 pixel tiles per batch
        # element so the parallel grid can be split across both cores.
        tp = min(tp, max(128, pl.cdiv(pl.cdiv(HW, 2), 128) * 128))
    if tp >= HW:
        tp = HW                       # single full-extent tile (always legal)
    elif tp >= 256:
        tp = (tp // 256) * 256        # MXU/lane-friendly multiple (v6e/v7x)
    else:
        tp = 128
    # Final ragged tile (HW % tp != 0) is handled by Pallas masking; no
    # jnp.pad HBM copy of the activations.

    # Free reshape NCHW -> (N, C, H*W): no activation transposes through HBM.
    g_mat = g.reshape(N, F_g, HW)
    x_mat = x.reshape(N, F_l, HW)

    # Transpose / cast only the (tiny) weights, once, on the host side.
    wgt = wg.T.astype(jnp.bfloat16)                       # (F_int, F_g)
    wxt = wx.T.astype(jnp.bfloat16)                       # (F_int, F_l)
    b2 = (bg + bx).astype(jnp.float32).reshape(F_int, 1)  # combined bias
    wp2 = wp.astype(jnp.float32).reshape(F_int, 1)
    bp2 = bp.astype(jnp.float32).reshape(1, 1)
    # NOTE(v6e/v7x): at production channel counts, additionally padding F_int
    # (weights + biases only) to a multiple of the MXU tile avoids partial
    # MXU passes; skipped here as it is counterproductive at small F_int.

    # Grid-invariant operands: single-buffered (no per-step DMA / 2nd buffer).
    w_const = dict(pipeline_mode=pl.Buffered(1))

    grid = (N, pl.cdiv(HW, tp))
    out = pl.pallas_call(
        _attention_gate_kernel,
        out_shape=jax.ShapeDtypeStruct((N, F_l, HW), x.dtype),
        grid_spec=pltpu.PrefetchScalarGridSpec(
            num_scalar_prefetch=0,
            grid=grid,
            in_specs=[
                pl.BlockSpec((None, F_g, tp), lambda n, i: (n, 0, i)),       # g
                pl.BlockSpec((None, F_l, tp), lambda n, i: (n, 0, i)),       # x
                pl.BlockSpec((F_int, F_g), lambda n, i: (0, 0), **w_const),  # Wg^T
                pl.BlockSpec((F_int, F_l), lambda n, i: (0, 0), **w_const),  # Wx^T
                pl.BlockSpec((F_int, 1), lambda n, i: (0, 0), **w_const),    # bg+bx
                pl.BlockSpec((F_int, 1), lambda n, i: (0, 0), **w_const),    # Wpsi
                pl.BlockSpec((1, 1), lambda n, i: (0, 0), **w_const),        # bpsi
            ],
            out_specs=pl.BlockSpec((None, F_l, tp), lambda n, i: (n, 0, i)),
        ),
        compiler_params=pltpu.CompilerParams(
            dimension_semantics=("parallel", "parallel"),
            vmem_limit_bytes=vmem_limit),
    )(g_mat, x_mat, wgt, wxt, b2, wp2, bp2)

    return out.reshape(N, F_l, H, W)


def _init_params(key, F_g, F_l, F_int):
    ks = jax.random.split(key, 9)
    p = {
        # 1x1 conv weights stored as (C_in, C_out); biases (C_out,)
        "wg": jax.random.normal(ks[0], (F_g, F_int), jnp.float32) * 0.1,
        "bg": jax.random.normal(ks[1], (F_int,), jnp.float32) * 0.1,
        "wx": jax.random.normal(ks[2], (F_l, F_int), jnp.float32) * 0.1,
        "bx": jax.random.normal(ks[3], (F_int,), jnp.float32) * 0.1,
        "wp": jax.random.normal(ks[4], (F_int, 1), jnp.float32) * 0.1,
        "bp": jax.random.normal(ks[5], (1,), jnp.float32) * 0.1,
        # eval-mode BatchNorm params (deterministic, non-trivial)
        "gn_g_gamma": 1.0 + 0.05 * jnp.arange(F_int, dtype=jnp.float32),
        "gn_g_beta": 0.01 * jnp.arange(F_int, dtype=jnp.float32),
        "gn_g_mean": 0.02 * jnp.arange(F_int, dtype=jnp.float32),
        "gn_g_var": 1.0 + 0.03 * jnp.arange(F_int, dtype=jnp.float32),
        "gn_x_gamma": 1.0 - 0.02 * jnp.arange(F_int, dtype=jnp.float32),
        "gn_x_beta": -0.01 * jnp.arange(F_int, dtype=jnp.float32),
        "gn_x_mean": 0.01 * jnp.arange(F_int, dtype=jnp.float32),
        "gn_x_var": 1.0 + 0.02 * jnp.arange(F_int, dtype=jnp.float32),
        "gn_p_gamma": jnp.array([1.1], jnp.float32),
        "gn_p_beta": jnp.array([0.05], jnp.float32),
        "gn_p_mean": jnp.array([0.02], jnp.float32),
        "gn_p_var": jnp.array([1.05], jnp.float32),
    }
    return p


def _reference(g, x, params):
    """Pure-JAX f32 reference of the AttentionGate forward (eval-mode BN)."""
    wg, bg = _fold_bn(params["wg"], params["bg"], params["gn_g_gamma"],
                      params["gn_g_beta"], params["gn_g_mean"],
                      params["gn_g_var"])
    wx, bx = _fold_bn(params["wx"], params["bx"], params["gn_x_gamma"],
                      params["gn_x_beta"], params["gn_x_mean"],
                      params["gn_x_var"])
    wp, bp = _fold_bn(params["wp"], params["bp"], params["gn_p_gamma"],
                      params["gn_p_beta"], params["gn_p_mean"],
                      params["gn_p_var"])
    g1 = jnp.einsum("nchw,cf->nfhw", g, wg) + bg[None, :, None, None]
    x1 = jnp.einsum("nchw,cf->nfhw", x, wx) + bx[None, :, None, None]
    a = jnp.maximum(g1 + x1, 0.0)
    psi = jax.nn.sigmoid(
        jnp.einsum("nfhw,fo->nohw", a, wp.reshape(-1, 1))
        + bp[None, :, None, None])
    return x * psi


if __name__ == "__main__":
    F_g, F_l, F_int = 8, 8, 8
    N, H, W = 2, 16, 16

    key = jax.random.PRNGKey(0)
    kg, kx, kp = jax.random.split(key, 3)
    g = jax.random.normal(kg, (N, F_g, H, W), jnp.float32)
    x = jax.random.normal(kx, (N, F_l, H, W), jnp.float32)
    params = _init_params(kp, F_g, F_l, F_int)

    out = jax.block_until_ready(attention_gate(g, x, params))

    ref = _reference(g, x, params)
    assert out.shape == (N, F_l, H, W)
    # bf16 MXU datapath vs f32 reference -> loose-but-tight-enough tolerance.
    err = float(jnp.max(jnp.abs(out - ref)))
    assert err < 1e-2, f"mismatch vs reference: max abs err {err}"

    print("KERNEL_OK")
</pallas_src>

<mosaic_0001>
module attributes {stable_mosaic.version = 11 : i64} {
  func.func @_attention_gate_kernel(%arg0: i32, %arg1: i32, %arg2: memref<1x8x256xf32, #tpu.memory_space<vmem>>, %arg3: memref<1x8x256xf32, #tpu.memory_space<vmem>>, %arg4: memref<8x8xbf16, #tpu.memory_space<vmem>>, %arg5: memref<8x8xbf16, #tpu.memory_space<vmem>>, %arg6: memref<8x1xf32, #tpu.memory_space<vmem>>, %arg7: memref<8x1xf32, #tpu.memory_space<vmem>>, %arg8: memref<1x1xf32, #tpu.memory_space<vmem>>, %arg9: memref<1x8x256xf32, #tpu.memory_space<vmem>>) attributes {dimension_semantics = [#tpu.dimension_semantics<parallel>, #tpu.dimension_semantics<parallel>], iteration_bounds = array<i64: 2, 1>, scalar_prefetch = 0 : i64, scratch_operands = 0 : i64, tpu.core_type = #tpu.core_type<tc>, window_params = [{transform_indices = @transform_0, window_bounds = array<i64: 1, 8, 256>}, {transform_indices = @transform_1, window_bounds = array<i64: 1, 8, 256>}, {pipeline_mode = #tpu.pipeline_mode<synchronous>, transform_indices = @transform_2, window_bounds = array<i64: 8, 8>}, {pipeline_mode = #tpu.pipeline_mode<synchronous>, transform_indices = @transform_3, window_bounds = array<i64: 8, 8>}, {pipeline_mode = #tpu.pipeline_mode<synchronous>, transform_indices = @transform_4, window_bounds = array<i64: 8, 1>}, {pipeline_mode = #tpu.pipeline_mode<synchronous>, transform_indices = @transform_5, window_bounds = array<i64: 8, 1>}, {pipeline_mode = #tpu.pipeline_mode<synchronous>, transform_indices = @transform_6, window_bounds = array<i64: 1, 1>}, {transform_indices = @transform_7, window_bounds = array<i64: 1, 8, 256>}]} {
    %c0 = arith.constant 0 : index
    %c0_0 = arith.constant 0 : index
    %c0_1 = arith.constant 0 : index
    %0 = vector.load %arg3[%c0, %c0_0, %c0_1] : memref<1x8x256xf32, #tpu.memory_space<vmem>>, vector<1x8x256xf32>
    %1 = vector.shape_cast %0 : vector<1x8x256xf32> to vector<8x256xf32>
    %c0_2 = arith.constant 0 : index
    %c0_3 = arith.constant 0 : index
    %2 = vector.load %arg4[%c0_2, %c0_3] : memref<8x8xbf16, #tpu.memory_space<vmem>>, vector<8x8xbf16>
    %c0_4 = arith.constant 0 : index
    %c0_5 = arith.constant 0 : index
    %c0_6 = arith.constant 0 : index
    %3 = vector.load %arg2[%c0_4, %c0_5, %c0_6] : memref<1x8x256xf32, #tpu.memory_space<vmem>>, vector<1x8x256xf32>
    %4 = vector.shape_cast %3 : vector<1x8x256xf32> to vector<8x256xf32>
    %5 = arith.truncf %4 : vector<8x256xf32> to vector<8x256xbf16>
    %cst = arith.constant dense<0.000000e+00> : vector<8x256xf32>
    %6 = tpu.matmul %2, %5, %cst {dimension_numbers = #tpu.dot_dimension_numbers<[1], [0], [0], [1], [0, 0, 1, 1], [], []>} : vector<8x8xbf16>, vector<8x256xbf16>, vector<8x256xf32> -> vector<8x256xf32>
    %c0_7 = arith.constant 0 : index
    %c0_8 = arith.constant 0 : index
    %7 = vector.load %arg5[%c0_7, %c0_8] : memref<8x8xbf16, #tpu.memory_space<vmem>>, vector<8x8xbf16>
    %8 = arith.truncf %1 : vector<8x256xf32> to vector<8x256xbf16>
    %cst_9 = arith.constant dense<0.000000e+00> : vector<8x256xf32>
    %9 = tpu.matmul %7, %8, %cst_9 {dimension_numbers = #tpu.dot_dimension_numbers<[1], [0], [0], [1], [0, 0, 1, 1], [], []>} : vector<8x8xbf16>, vector<8x256xbf16>, vector<8x256xf32> -> vector<8x256xf32>
    %10 = arith.addf %6, %9 : vector<8x256xf32>
    %c0_10 = arith.constant 0 : index
    %c0_11 = arith.constant 0 : index
    %11 = vector.load %arg6[%c0_10, %c0_11] : memref<8x1xf32, #tpu.memory_space<vmem>>, vector<8x1xf32>
    %12 = vector.broadcast %11 : vector<8x1xf32> to vector<8x256xf32>
    %13 = arith.addf %10, %12 : vector<8x256xf32>
    %cst_12 = arith.constant 0.000000e+00 : f32
    %14 = vector.broadcast %cst_12 : f32 to vector<8x256xf32>
    %15 = arith.maximumf %13, %14 : vector<8x256xf32>
    %c0_13 = arith.constant 0 : index
    %c0_14 = arith.constant 0 : index
    %16 = vector.load %arg7[%c0_13, %c0_14] : memref<8x1xf32, #tpu.memory_space<vmem>>, vector<8x1xf32>
    %17 = vector.broadcast %16 : vector<8x1xf32> to vector<8x256xf32>
    %18 = arith.mulf %17, %15 : vector<8x256xf32>
    %cst_15 = arith.constant dense<0.000000e+00> : vector<256xf32>
    %19 = vector.multi_reduction <add>, %18, %cst_15 [0] : vector<8x256xf32> to vector<256xf32>
    %20 = vector.shape_cast %19 : vector<256xf32> to vector<1x256xf32>
    %c0_16 = arith.constant 0 : index
    %c0_17 = arith.constant 0 : index
    %21 = vector.load %arg8[%c0_16, %c0_17] : memref<1x1xf32, #tpu.memory_space<vmem>>, vector<1x1xf32>
    %22 = vector.broadcast %21 : vector<1x1xf32> to vector<1x256xf32>
    %23 = arith.addf %20, %22 : vector<1x256xf32>
    %24 = arith.negf %23 : vector<1x256xf32>
    %25 = math.exp %24 : vector<1x256xf32>
    %cst_18 = arith.constant 1.000000e+00 : f32
    %26 = vector.broadcast %cst_18 : f32 to vector<1x256xf32>
    %27 = arith.addf %26, %25 : vector<1x256xf32>
    %28 = arith.divf %26, %27 : vector<1x256xf32>
    %29 = vector.broadcast %28 : vector<1x256xf32> to vector<8x256xf32>
    %30 = arith.mulf %1, %29 : vector<8x256xf32>
    %c0_19 = arith.constant 0 : index
    %c0_20 = arith.constant 0 : index
    %c0_21 = arith.constant 0 : index
    %31 = vector.load %arg9[%c0_19, %c0_20, %c0_21] : memref<1x8x256xf32, #tpu.memory_space<vmem>>, vector<1x8x256xf32>
    %32 = vector.shape_cast %31 : vector<1x8x256xf32> to vector<8x256xf32>
    %33 = vector.shape_cast %30 : vector<8x256xf32> to vector<1x8x256xf32>
    tpu.vector_store %arg9[%c0_19, %c0_20, %c0_21], %33 {strides = array<i32>} : memref<1x8x256xf32, #tpu.memory_space<vmem>>, vector<1x8x256xf32>,
    return
  }
  func.func @transform_0(%arg0: i32, %arg1: i32) -> (i32, i32, i32) {
    %c0_i32 = arith.constant 0 : i32
    %c0_i32_0 = arith.constant 0 : i32
    return %arg0, %c0_i32, %arg1 : i32, i32, i32
  }
  func.func @transform_1(%arg0: i32, %arg1: i32) -> (i32, i32, i32) {
    %c0_i32 = arith.constant 0 : i32
    %c0_i32_0 = arith.constant 0 : i32
    return %arg0, %c0_i32, %arg1 : i32, i32, i32
  }
  func.func @transform_2(%arg0: i32, %arg1: i32) -> (i32, i32) {
    %c0_i32 = arith.constant 0 : i32
    %c0_i32_0 = arith.constant 0 : i32
    %c0_i32_1 = arith.constant 0 : i32
    return %c0_i32, %c0_i32_0 : i32, i32
  }
  func.func @transform_3(%arg0: i32, %arg1: i32) -> (i32, i32) {
    %c0_i32 = arith.constant 0 : i32
    %c0_i32_0 = arith.constant 0 : i32
    %c0_i32_1 = arith.constant 0 : i32
    return %c0_i32, %c0_i32_0 : i32, i32
  }
  func.func @transform_4(%arg0: i32, %arg1: i32) -> (i32, i32) {
    %c0_i32 = arith.constant 0 : i32
    %c0_i32_0 = arith.constant 0 : i32
    %c0_i32_1 = arith.constant 0 : i32
    return %c0_i32, %c0_i32_0 : i32, i32
  }
  func.func @transform_5(%arg0: i32, %arg1: i32) -> (i32, i32) {
    %c0_i32 = arith.constant 0 : i32
    %c0_i32_0 = arith.constant 0 : i32
    %c0_i32_1 = arith.constant 0 : i32
    return %c0_i32, %c0_i32_0 : i32, i32
  }
  func.func @transform_6(%arg0: i32, %arg1: i32) -> (i32, i32) {
    %c0_i32 = arith.constant 0 : i32
    %c0_i32_0 = arith.constant 0 : i32
    %c0_i32_1 = arith.constant 0 : i32
    return %c0_i32, %c0_i32_0 : i32, i32
  }
  func.func @transform_7(%arg0: i32, %arg1: i32) -> (i32, i32, i32) {
    %c0_i32 = arith.constant 0 : i32
    %c0_i32_0 = arith.constant 0 : i32
    return %arg0, %c0_i32, %arg1 : i32, i32, i32
  }
}

</mosaic_0001>

<llo_original>
// kernel: attention_gate.1
$region0: #{attention_gate.1}
  #allocation0 [shape = 'u32[]', space=smem, size = 0x4, offset = 0x4, fixed_abs, tag = 'smem constant byte address 0x4 - core index']
  #allocation1 [shape = 'u32[72,128]{1,0:T(1,128)}', space=vmem, size = 0x9000, scoped, tag = 'internal scratch']
  #allocation2 [shape = 'f32[1,1]{1,0:T(1,128)S(1)}', space=vmem, size = 0x200, scoped, tag = 'scoped memory for attention_gate.1']
  %s0 = inlined_call_operand.vmem [shape: f32[2,8,256], index: 0, kind: input, shape index: {}]
  %s1 = inlined_call_operand.vmem [shape: f32[2,8,256], index: 1, kind: input, shape index: {}]
  %s2 = inlined_call_operand.vmem [shape: bf16[8,8], index: 2, kind: input, shape index: {}]
  %s3 = inlined_call_operand.vmem [shape: bf16[8,8], index: 3, kind: input, shape index: {}]
  %s4 = inlined_call_operand.vmem [shape: f32[8,1], index: 4, kind: input, shape index: {}]
  %s5 = inlined_call_operand.vmem [shape: f32[8,1], index: 5, kind: input, shape index: {}]
  %s6 = inlined_call_operand.<no memory space> [shape: f32[1,1], index: 6, kind: input, shape index: {}]
  %s7 = inlined_call_operand.vmem [shape: f32[2,8,256], index: 7, kind: output, shape index: {}]
  %s8 = sld [smem:[#allocation0]]
  $region61: #{attention_gate.1} parent=0
    _
  %s10 = ssub.s32 1, %s8
  %s11 = scalar_select 0, %s10, %s8
  %v12 = vstv %s6
  %13 = vst [vmem:[#allocation2] sm:$0x1] %v12
  loop: start=0, step=1, limit=4
  $region2: #{attention_gate.1} parent=0 // loop_pre_header
    _
  $region3: #{attention_gate.1} parent=0 // loop_header
    %s15 = sphi 0, %s19
    %p16 = scmp.ge.s32.totalorder %s15, 4
    %s22 = sphi 0, %s34
    %s23 = sphi 0, %s30
    %s24 = sphi 0, %s22
    %s25 = sphi 0, %s23
    %s26 = sphi 0, %s24
    %s27 = sphi 0, %s25
    %s39 = sphi 0, %s41
    %s42 = sphi 0, %s39
    %s43 = sphi 0, %s42
    %s59 = sphi 0, %s43
    %s67 = sphi 0, %s69
    %s70 = sphi 0, %s67
    %s71 = sphi 0, %s70
    %s87 = sphi 0, %s71
    %s91 = sphi 0, %s91
    %s93 = sphi 0, %s91
    %s94 = sphi 0, %s93
    %s108 = sphi 0, %s94
    %s112 = sphi 0, %s112
    %s114 = sphi 0, %s112
    %s115 = sphi 0, %s114
    %s129 = sphi 0, %s115
    %s133 = sphi 0, %s133
    %s135 = sphi 0, %s133
    %s136 = sphi 0, %s135
    %s150 = sphi 0, %s136
    %s154 = sphi 0, %s154
    %s156 = sphi 0, %s154
    %s157 = sphi 0, %s156
    %s171 = sphi 0, %s157
    %s175 = sphi 0, %s175
    %s177 = sphi 0, %s175
    %s178 = sphi 0, %s177
    %s192 = sphi 0, %s178
    %s200 = sphi 0, %s202
    %s203 = sphi 0, %s200
    %s204 = sphi 0, %s203
    %s220 = sphi 0, %s204
  $region4: #{attention_gate.1} parent=0 // loop_header_branch
    %18 = sbr.rel (%p16) target = $region8
  $region5: #{attention_gate.1} parent=0 // loop_body
    %s20 = ssub.s32 %s15, 1
    %s21 = ssub.s32 %s15, 2
    %s28 = sadd.s32 1, %s23
    %p29 = scmp.ge.s32.totalorder %s28, 1
    %s30 = scalar_select %p29, 0, %s28
    %s31 = sadd.s32 1, %s22
    %s32 = scalar_select %p29, %s31, %s22
    %p33 = scmp.ge.s32.totalorder %s32, 2
    %s34 = scalar_select %p33, 0, %s32
    %s35 = ssub.s32 %s22, %s34
    %s36 = ssub.s32 %s23, %s30
    %s37 = sor.u32 %s35, %s36
    %p38 = scmp.eq.s32.totalorder %s37, 0
    %s40 = sadd.s32 %s39, 1
    %s41 = scalar_select %p38, %s39, %s40
    %p44 = pneg %p38
    %p45 = scmp.eq.s32.totalorder %s15, 1
    %p46 = por %p44, %p45
    %p47 = scmp.ne.s32.totalorder %s39, %s42
    %p48 = scmp.eq.s32.totalorder %s15, 0
    %p49 = por %p47, %p48
    %p50 = scmp.ne.s32.totalorder %s39, %s42
    %p51 = scmp.eq.s32.totalorder %s20, 1
    %p52 = por %p50, %p51
    %p53 = scmp.ne.s32.totalorder %s42, %s43
    %p54 = scmp.eq.s32.totalorder %s20, 0
    %p55 = por %p53, %p54
    %p56 = scmp.ne.s32.totalorder %s42, %s43
    %p57 = scmp.eq.s32.totalorder %s21, 1
    %p58 = por %p56, %p57
    %p60 = scmp.ne.s32.totalorder %s43, %s59
    %p61 = scmp.eq.s32.totalorder %s21, 0
    %p62 = por %p60, %p61
    %s63 = ssub.s32 %s22, %s34
    %s64 = ssub.s32 %s23, %s30
    %s65 = sor.u32 %s63, %s64
    %p66 = scmp.eq.s32.totalorder %s65, 0
    %s68 = sadd.s32 %s67, 1
    %s69 = scalar_select %p66, %s67, %s68
    %p72 = pneg %p66
    %p73 = scmp.eq.s32.totalorder %s15, 1
    %p74 = por %p72, %p73
    %p75 = scmp.ne.s32.totalorder %s67, %s70
    %p76 = scmp.eq.s32.totalorder %s15, 0
    %p77 = por %p75, %p76
    %p78 = scmp.ne.s32.totalorder %s67, %s70
    %p79 = scmp.eq.s32.totalorder %s20, 1
    %p80 = por %p78, %p79
    %p81 = scmp.ne.s32.totalorder %s70, %s71
    %p82 = scmp.eq.s32.totalorder %s20, 0
    %p83 = por %p81, %p82
    %p84 = scmp.ne.s32.totalorder %s70, %s71
    %p85 = scmp.eq.s32.totalorder %s21, 1
    %p86 = por %p84, %p85
    %p88 = scmp.ne.s32.totalorder %s71, %s87
    %p89 = scmp.eq.s32.totalorder %s21, 0
    %p90 = por %p88, %p89
    %s92 = sadd.s32 %s91, 1
    %p95 = scmp.eq.s32.totalorder %s15, 1
    %p96 = scmp.ne.s32.totalorder %s91, %s93
    %p97 = scmp.eq.s32.totalorder %s15, 0
    %p98 = por %p96, %p97
    %p99 = scmp.ne.s32.totalorder %s91, %s93
    %p100 = scmp.eq.s32.totalorder %s20, 1
    %p101 = por %p99, %p100
    %p102 = scmp.ne.s32.totalorder %s93, %s94
    %p103 = scmp.eq.s32.totalorder %s20, 0
    %p104 = por %p102, %p103
    %p105 = scmp.ne.s32.totalorder %s93, %s94
    %p106 = scmp.eq.s32.totalorder %s21, 1
    %p107 = por %p105, %p106
    %p109 = scmp.ne.s32.totalorder %s94, %s108
    %p110 = scmp.eq.s32.totalorder %s21, 0
    %p111 = por %p109, %p110
    %s113 = sadd.s32 %s112, 1
    %p116 = scmp.eq.s32.totalorder %s15, 1
    %p117 = scmp.ne.s32.totalorder %s112, %s114
    %p118 = scmp.eq.s32.totalorder %s15, 0
    %p119 = por %p117, %p118
    %p120 = scmp.ne.s32.totalorder %s112, %s114
    %p121 = scmp.eq.s32.totalorder %s20, 1
    %p122 = por %p120, %p121
    %p123 = scmp.ne.s32.totalorder %s114, %s115
    %p124 = scmp.eq.s32.totalorder %s20, 0
    %p125 = por %p123, %p124
    %p126 = scmp.ne.s32.totalorder %s114, %s115
    %p127 = scmp.eq.s32.totalorder %s21, 1
    %p128 = por %p126, %p127
    %p130 = scmp.ne.s32.totalorder %s115, %s129
    %p131 = scmp.eq.s32.totalorder %s21, 0
    %p132 = por %p130, %p131
    %s134 = sadd.s32 %s133, 1
    %p137 = scmp.eq.s32.totalorder %s15, 1
    %p138 = scmp.ne.s32.totalorder %s133, %s135
    %p139 = scmp.eq.s32.totalorder %s15, 0
    %p140 = por %p138, %p139
    %p141 = scmp.ne.s32.totalorder %s133, %s135
    %p142 = scmp.eq.s32.totalorder %s20, 1
    %p143 = por %p141, %p142
    %p144 = scmp.ne.s32.totalorder %s135, %s136
    %p145 = scmp.eq.s32.totalorder %s20, 0
    %p146 = por %p144, %p145
    %p147 = scmp.ne.s32.totalorder %s135, %s136
    %p148 = scmp.eq.s32.totalorder %s21, 1
    %p149 = por %p147, %p148
    %p151 = scmp.ne.s32.totalorder %s136, %s150
    %p152 = scmp.eq.s32.totalorder %s21, 0
    %p153 = por %p151, %p152
    %s155 = sadd.s32 %s154, 1
    %p158 = scmp.eq.s32.totalorder %s15, 1
    %p159 = scmp.ne.s32.totalorder %s154, %s156
    %p160 = scmp.eq.s32.totalorder %s15, 0
    %p161 = por %p159, %p160
    %p162 = scmp.ne.s32.totalorder %s154, %s156
    %p163 = scmp.eq.s32.totalorder %s20, 1
    %p164 = por %p162, %p163
    %p165 = scmp.ne.s32.totalorder %s156, %s157
    %p166 = scmp.eq.s32.totalorder %s20, 0
    %p167 = por %p165, %p166
    %p168 = scmp.ne.s32.totalorder %s156, %s157
    %p169 = scmp.eq.s32.totalorder %s21, 1
    %p170 = por %p168, %p169
    %p172 = scmp.ne.s32.totalorder %s157, %s171
    %p173 = scmp.eq.s32.totalorder %s21, 0
    %p174 = por %p172, %p173
    %s176 = sadd.s32 %s175, 1
    %p179 = scmp.eq.s32.totalorder %s15, 1
    %p180 = scmp.ne.s32.totalorder %s175, %s177
    %p181 = scmp.eq.s32.totalorder %s15, 0
    %p182 = por %p180, %p181
    %p183 = scmp.ne.s32.totalorder %s175, %s177
    %p184 = scmp.eq.s32.totalorder %s20, 1
    %p185 = por %p183, %p184
    %p186 = scmp.ne.s32.totalorder %s177, %s178
    %p187 = scmp.eq.s32.totalorder %s20, 0
    %p188 = por %p186, %p187
    %p189 = scmp.ne.s32.totalorder %s177, %s178
    %p190 = scmp.eq.s32.totalorder %s21, 1
    %p191 = por %p189, %p190
    %p193 = scmp.ne.s32.totalorder %s178, %s192
    %p194 = scmp.eq.s32.totalorder %s21, 0
    %p195 = por %p193, %p194
    %s196 = ssub.s32 %s22, %s34
    %s197 = ssub.s32 %s23, %s30
    %s198 = sor.u32 %s196, %s197
    %p199 = scmp.eq.s32.totalorder %s198, 0
    %s201 = sadd.s32 %s200, 1
    %s202 = scalar_select %p199, %s200, %s201
    %p205 = pneg %p199
    %p206 = scmp.eq.s32.totalorder %s15, 1
    %p207 = por %p205, %p206
    %p208 = scmp.ne.s32.totalorder %s200, %s203
    %p209 = scmp.eq.s32.totalorder %s15, 0
    %p210 = por %p208, %p209
    %p211 = scmp.ne.s32.totalorder %s200, %s203
    %p212 = scmp.eq.s32.totalorder %s20, 1
    %p213 = por %p211, %p212
    %p214 = scmp.ne.s32.totalorder %s203, %s204
    %p215 = scmp.eq.s32.totalorder %s20, 0
    %p216 = por %p214, %p215
    %p217 = scmp.ne.s32.totalorder %s203, %s204
    %p218 = scmp.eq.s32.totalorder %s21, 1
    %p219 = por %p217, %p218
    %p221 = scmp.ne.s32.totalorder %s204, %s220
    %p222 = scmp.eq.s32.totalorder %s21, 0
    %p223 = por %p221, %p222
    %p224 = scmp.le.s32.totalorder 1, %s15
    %p225 = scmp.lt.s32.totalorder %s15, 3
    %p226 = pnand %p224, %p225
    %p227 = pneg %p226
    // Predicated region
    $region9: #{attention_gate.1} parent=5 // pred_check
      _
    $region10: #{attention_gate.1} parent=5 // pred_check_branch
      %229 = sbr.rel (%p226) target = $region12
    $region11: #{attention_gate.1} parent=5 // pred_region
      %s230 = ssub.s32 %s15, 1
      // Predicated region
      $region13: #{attention_gate.1} parent=11 // pred_check
        %p231 = pneg %p104
      $region14: #{attention_gate.1} parent=11 // pred_check_branch
        %233 = sbr.rel (%p231) target = $region16
      $region15: #{attention_gate.1} parent=11 // pred_region
        _
      $region16: #{attention_gate.1} parent=11 // pred_fallthru
        _
      // Predicated region
      $region17: #{attention_gate.1} parent=11 // pred_check
        %p234 = pneg %p125
      $region18: #{attention_gate.1} parent=11 // pred_check_branch
        %236 = sbr.rel (%p234) target = $region20
      $region19: #{attention_gate.1} parent=11 // pred_region
        _
      $region20: #{attention_gate.1} parent=11 // pred_fallthru
        _
      // Predicated region
      $region21: #{attention_gate.1} parent=11 // pred_check
        %p237 = pneg %p146
      $region22: #{attention_gate.1} parent=11 // pred_check_branch
        %239 = sbr.rel (%p237) target = $region24
      $region23: #{attention_gate.1} parent=11 // pred_region
        _
      $region24: #{attention_gate.1} parent=11 // pred_fallthru
        _
      // Predicated region
      $region25: #{attention_gate.1} parent=11 // pred_check
        %p240 = pneg %p167
      $region26: #{attention_gate.1} parent=11 // pred_check_branch
        %242 = sbr.rel (%p240) target = $region28
      $region27: #{attention_gate.1} parent=11 // pred_region
        _
      $region28: #{attention_gate.1} parent=11 // pred_fallthru
        _
      // Predicated region
      $region29: #{attention_gate.1} parent=11 // pred_check
        %p243 = pneg %p188
      $region30: #{attention_gate.1} parent=11 // pred_check_branch
        %245 = sbr.rel (%p243) target = $region32
      $region31: #{attention_gate.1} parent=11 // pred_region
        _
      $region32: #{attention_gate.1} parent=11 // pred_fallthru
        _
    $region12: #{attention_gate.1} parent=5 // pred_fallthru
      _
    %p246 = scmp.lt.s32.totalorder %s15, 2
    // Predicated region
    $region33: #{attention_gate.1} parent=5 // pred_check
      %p247 = pneg %p246
    $region34: #{attention_gate.1} parent=5 // pred_check_branch
      %249 = sbr.rel (%p247) target = $region36
    $region35: #{attention_gate.1} parent=5 // pred_region
      // Predicated region
      $region37: #{attention_gate.1} parent=35 // pred_check
        %p250 = pneg %p49
      $region38: #{attention_gate.1} parent=35 // pred_check_branch
        %252 = sbr.rel (%p250) target = $region40
      $region39: #{attention_gate.1} parent=35 // pred_region
        %s253 = smul.u32 2, %s23
        %p254 = scmp.lt.s32.totalorder %s22, 1
        %s255 = scalar_select %p254, %s22, 1
        %p256 = scmp.lt.s32.totalorder %s253, 1
        %s257 = scalar_select %p256, %s253, 1
        %s258 = smul.addr %s255, 2
        %s259 = sadd.s32 %s257, %s258
        %s260 = smul.addr %s259, 8
        %s261 = scalar_lea.vmem %s0, %s260
        %s262 = smul.u32 2, %s23
      $region40: #{attention_gate.1} parent=35 // pred_fallthru
        _
      // Predicated region
      $region41: #{attention_gate.1} parent=35 // pred_check
        %p263 = pneg %p77
      $region42: #{attention_gate.1} parent=35 // pred_check_branch
        %265 = sbr.rel (%p263) target = $region44
      $region43: #{attention_gate.1} parent=35 // pred_region
        %s266 = smul.u32 2, %s23
        %p267 = scmp.lt.s32.totalorder %s22, 1
        %s268 = scalar_select %p267, %s22, 1
        %p269 = scmp.lt.s32.totalorder %s266, 1
        %s270 = scalar_select %p269, %s266, 1
        %s271 = smul.addr %s268, 2
        %s272 = sadd.s32 %s270, %s271
        %s273 = smul.addr %s272, 8
        %s274 = scalar_lea.vmem %s1, %s273
        %s275 = smul.u32 2, %s23
      $region44: #{attention_gate.1} parent=35 // pred_fallthru
        _
    $region36: #{attention_gate.1} parent=5 // pred_fallthru
      _
    %p276 = scmp.le.s32.totalorder 1, %s15
    %p277 = scmp.lt.s32.totalorder %s15, 3
    %p278 = pnand %p276, %p277
    %p279 = pneg %p278
    // Predicated region
    $region45: #{attention_gate.1} parent=5 // pred_check
      _
    $region46: #{attention_gate.1} parent=5 // pred_check_branch
      %281 = sbr.rel (%p278) target = $region48
    $region47: #{attention_gate.1} parent=5 // pred_region
      %s282 = ssub.s32 %s15, 1
      %s283 = smul.u32 2, %s25
      %p284 = scmp.lt.s32.totalorder %s24, 1
      %s285 = scalar_select %p284, %s24, 1
      %p286 = scmp.lt.s32.totalorder %s283, 1
      %s287 = scalar_select %p286, %s283, 1
      %s288 = smul.addr %s285, 2
      %s289 = sadd.s32 %s287, %s288
      %s290 = smul.addr %s289, 8
      %s291 = scalar_lea.vmem %s0, %s290
      %p292 = pneg %p55
      %p293 = pneg %p52
      %s294 = smul.u32 2, %s25
      %p295 = scmp.lt.s32.totalorder %s24, 1
      %s296 = scalar_select %p295, %s24, 1
      %p297 = scmp.lt.s32.totalorder %s294, 1
      %s298 = scalar_select %p297, %s294, 1
      %s299 = smul.addr %s296, 2
      %s300 = sadd.s32 %s298, %s299
      %s301 = smul.addr %s300, 8
      %s302 = scalar_lea.vmem %s1, %s301
      %p303 = pneg %p83
      %p304 = pneg %p80
      %p305 = pneg %p104
      %p306 = pneg %p101
      %p307 = pneg %p125
      %p308 = pneg %p122
      %p309 = pneg %p146
      %p310 = pneg %p143
      %p311 = pneg %p167
      %p312 = pneg %p164
      %p313 = pneg %p188
      %p314 = pneg %p185
      %p315 = pneg %p216
      %p316 = pneg %p213
      %s317 = smul.u32 2, %s25
      %p318 = scmp.lt.s32.totalorder %s24, 1
      %s319 = scalar_select %p318, %s24, 1
      %p320 = scmp.lt.s32.totalorder %s317, 1
      %s321 = scalar_select %p320, %s317, 1
      %s322 = smul.addr %s319, 2
      %s323 = sadd.s32 %s321, %s322
      %s324 = smul.addr %s323, 8
      %s325 = scalar_lea.vmem %s7, %s324
      %s326 = smul.u32 2, %s25
      %p327 = scmp.lt.s32.totalorder %s24, 1
      %s328 = scalar_select %p327, %s24, 1
      %p329 = scmp.lt.s32.totalorder %s326, 1
      %s330 = scalar_select %p329, %s326, 1
      %s331 = smul.addr %s328, 2
      %s332 = sadd.s32 %s330, %s331
      %s333 = smul.addr %s332, 8
      %s334 = scalar_lea.vmem %s0, %s333
      %s335 = smul.u32 2, %s25
      %s336 = smul.u32 2, %s25
      %p337 = scmp.lt.s32.totalorder %s24, 1
      %s338 = scalar_select %p337, %s24, 1
      %p339 = scmp.lt.s32.totalorder %s336, 1
      %s340 = scalar_select %p339, %s336, 1
      %s341 = smul.addr %s338, 2
      %s342 = sadd.s32 %s340, %s341
      %s343 = smul.addr %s342, 8
      %s344 = scalar_lea.vmem %s1, %s343
      %s345 = smul.u32 2, %s25
      %s346 = smul.u32 2, %s25
      %p347 = scmp.lt.s32.totalorder %s24, 1
      %s348 = scalar_select %p347, %s24, 1
      %p349 = scmp.lt.s32.totalorder %s346, 1
      %s350 = scalar_select %p349, %s346, 1
      %s351 = smul.addr %s348, 2
      %s352 = sadd.s32 %s350, %s351
      %s353 = smul.addr %s352, 8
      %s354 = scalar_lea.vmem %s7, %s353
      %s355 = smul.u32 2, %s25
      %v357 = vld [vmem:[%s344] sm:$0xff]
      %v358 = vld [vmem:[%s344 + $0x8] sm:$0xff]
      %v359 = vld [vmem:[%s2] sm:$0xf]
      %v360 = vld [vmem:[%s334] sm:$0xff]
      %v361 = vld [vmem:[%s334 + $0x8] sm:$0xff]
      %v362 = vpack.c.bf16 %v360, %v360
      %v363 = vpack.c.bf16 %v361, %v361
      %v364 = vld [vmem:[%s3] sm:$0xf]
      %v365 = vpack.c.bf16 %v357, %v357
      %v366 = vpack.c.bf16 %v358, %v358
      %vm367 = vcmask 64512
      %v369 = vsel %vm367, %v364, 0
      %vm371 = vcmask 1043456
      %v373 = vsel %vm371, %v365, 0
      %v376 = vsel %vm371, %v366, 0
      %378 = vmatpush.bf16.msra.mxu0 0
      %379 = vmatpush.bf16.msra.mxu0 0
      %380 = vmatpush.bf16.msra.mxu0 0
      %381 = vmatpush.bf16.msra.mxu0 0
      %382 = vmatpush.bf16.msra.mxu0 0
      %383 = vmatpush.bf16.msra.mxu0 0
      %384 = vmatpush.bf16.msra.mxu0 0
      %385 = vmatpush.bf16.msra.mxu0 %v373
      %386 = vmatmul.bf16.gmra.mxu0 %v369
      %v387 = vpop.f32.mrf.mxu0
      %v388 = vadd.f32 0.0, %v387
      %v389 = vpop.f32.mrf.mxu0
      %390 = vdwg.mxu0
      %391 = vmatpush.bf16.msra.mxu0 0
      %392 = vmatpush.bf16.msra.mxu0 0
      %393 = vmatpush.bf16.msra.mxu0 0
      %394 = vmatpush.bf16.msra.mxu0 0
      %395 = vmatpush.bf16.msra.mxu0 0
      %396 = vmatpush.bf16.msra.mxu0 0
      %397 = vmatpush.bf16.msra.mxu0 0
      %398 = vmatpush.bf16.msra.mxu0 %v376
      %399 = vmatmul.bf16.gmra.mxu0 %v369
      %v400 = vpop.f32.mrf.mxu0
      %v401 = vadd.f32 0.0, %v400
      %v402 = vpop.f32.mrf.mxu0
      %403 = vdwg.mxu0
      %v405 = vsel %vm367, %v359, 0
      %v408 = vsel %vm371, %v362, 0
      %v411 = vsel %vm371, %v363, 0
      %413 = vmatpush.bf16.msra.mxu0 0
      %414 = vmatpush.bf16.msra.mxu0 0
      %415 = vmatpush.bf16.msra.mxu0 0
      %416 = vmatpush.bf16.msra.mxu0 0
      %417 = vmatpush.bf16.msra.mxu0 0
      %418 = vmatpush.bf16.msra.mxu0 0
      %419 = vmatpush.bf16.msra.mxu0 0
      %420 = vmatpush.bf16.msra.mxu0 %v408
      %421 = vmatmul.bf16.gmra.mxu0 %v405
      %v422 = vpop.f32.mrf.mxu0
      %v423 = vadd.f32 %v388, %v422
      %v424 = vpop.f32.mrf.mxu0
      %425 = vdwg.mxu0
      %426 = vmatpush.bf16.msra.mxu0 0
      %427 = vmatpush.bf16.msra.mxu0 0
      %428 = vmatpush.bf16.msra.mxu0 0
      %429 = vmatpush.bf16.msra.mxu0 0
      %430 = vmatpush.bf16.msra.mxu0 0
      %431 = vmatpush.bf16.msra.mxu0 0
      %432 = vmatpush.bf16.msra.mxu0 0
      %433 = vmatpush.bf16.msra.mxu0 %v411
      %434 = vmatmul.bf16.gmra.mxu0 %v405
      %v435 = vpop.f32.mrf.mxu0
      %v436 = vadd.f32 %v401, %v435
      %v437 = vpop.f32.mrf.mxu0
      %438 = vdwg.mxu0
      %v439 = vld [vmem:[%s4] sm:$0xff]
      %441 = vset.pattern.permute.xlu0 0
      %442 = vperm.xlu0 %441, %v439
      %v443 = vpop.permute.xlu0 %442
      %v445 = vadd.f32 %v423, %v443
      %v446 = vadd.f32 %v436, %v443
      %v447 = vmax.f32 %v445, 0.0
      %v448 = vmax.f32 %v446, 0.0
      %v449 = vld [vmem:[%s5] sm:$0xff]
      %451 = vset.pattern.permute.xlu0 0
      %452 = vperm.xlu0 %451, %v449
      %v453 = vpop.permute.xlu0 %452
      %v455 = vmul.f32 %v453, %v447
      %v456 = vmul.f32 %v453, %v448
      %v457 = vrot.slane %v455, 4
      %v458 = vadd.f32 %v455, %v457
      %v459 = vrot.slane %v458, 2
      %v460 = vadd.f32 %v458, %v459
      %v461 = vrot.slane %v460, 1
      %v462 = vadd.f32 %v460, %v461
      %v463 = vrot.slane %v456, 4
      %v464 = vadd.f32 %v456, %v463
      %v465 = vrot.slane %v464, 2
      %v466 = vadd.f32 %v464, %v465
      %v467 = vrot.slane %v466, 1
      %v468 = vadd.f32 %v466, %v467
      %v469 = vld [vmem:[#allocation2] sm:$0x1]
      %471 = vset.pattern.permute.xlu0 0
      %472 = vperm.xlu0 %471, %v469
      %v473 = vpop.permute.xlu0 %472
      %v475 = vperm.slane %v473, 0
      %v476 = vadd.f32 %v462, %v475
      %v477 = vadd.f32 %v468, %v475
      %v478 = vxor.u32 %v476, 2147483648
      %v479 = vxor.u32 %v477, 2147483648
      %v480 = vmul.f32 %v478, 1.442695
      %v481 = vpow.pop %v480
      %v482 = vmul.f32 %v479, 1.442695
      %v483 = vpow.pop %v482
      %v484 = vadd.f32 %v481, 1.0
      %v485 = vadd.f32 %v483, 1.0
      %v486 = vrcp.pop %v484
      %v487 = vmul.f32 %v484, %v486
      %v488 = vsub.f32 1.0, %v487
      %v489 = vmul.f32 %v486, %v488
      %v490 = vadd.f32 %v486, %v489
      %vm491 = vweird.f32 %v484
      %vm492 = vweird.f32 %v486
      %vm493 = vmor %vm491, %vm492
      %v494 = vsel %vm493, %v486, %v490
      %v495 = vand.u32 2147483647, %v484
      %vm496 = vcmp.eq.f32.partialorder %v495, 8.507059e+37
      %v497 = vand.u32 %v484, 2147483648
      %v498 = vor.u32 1.1754944e-38, %v497
      %v499 = vsel %vm496, %v498, %v494
      %v500 = vmul.f32 1.0, %v499
      %v501 = vrcp.pop %v485
      %v502 = vmul.f32 %v485, %v501
      %v503 = vsub.f32 1.0, %v502
      %v504 = vmul.f32 %v501, %v503
      %v505 = vadd.f32 %v501, %v504
      %vm506 = vweird.f32 %v485
      %vm507 = vweird.f32 %v501
      %vm508 = vmor %vm506, %vm507
      %v509 = vsel %vm508, %v501, %v505
      %v510 = vand.u32 2147483647, %v485
      %vm511 = vcmp.eq.f32.partialorder %v510, 8.507059e+37
      %v512 = vand.u32 %v485, 2147483648
      %v513 = vor.u32 1.1754944e-38, %v512
      %v514 = vsel %vm511, %v513, %v509
      %v515 = vmul.f32 1.0, %v514
      %v516 = vmul.f32 %v357, %v500
      %v517 = vmul.f32 %v358, %v515
      %518 = vst [vmem:[%s354] sm:$0xff] %v516
      %519 = vst [vmem:[%s354 + $0x8] sm:$0xff] %v517
      %s520 = smul.u32 2, %s25
      %p521 = scmp.lt.s32.totalorder %s24, 1
      %s522 = scalar_select %p521, %s24, 1
      %p523 = scmp.lt.s32.totalorder %s520, 1
      %s524 = scalar_select %p523, %s520, 1
      %s525 = smul.addr %s522, 2
      %s526 = sadd.s32 %s524, %s525
      %s527 = smul.addr %s526, 8
      %s528 = scalar_lea.vmem %s7, %s527
      // Predicated region
      $region49: #{attention_gate.1} parent=47 // pred_check
        %p529 = pneg %p213
      $region50: #{attention_gate.1} parent=47 // pred_check_branch
        %531 = sbr.rel (%p529) target = $region52
      $region51: #{attention_gate.1} parent=47 // pred_region
        %s532 = smul.u32 2, %s25
      $region52: #{attention_gate.1} parent=47 // pred_fallthru
        _
    $region48: #{attention_gate.1} parent=5 // pred_fallthru
      _
    %p533 = scmp.le.s32.totalorder 2, %s15
    // Predicated region
    $region53: #{attention_gate.1} parent=5 // pred_check
      %p534 = pneg %p533
    $region54: #{attention_gate.1} parent=5 // pred_check_branch
      %536 = sbr.rel (%p534) target = $region56
    $region55: #{attention_gate.1} parent=5 // pred_region
      %s537 = ssub.s32 %s15, 2
      // Predicated region
      $region57: #{attention_gate.1} parent=55 // pred_check
        %p538 = pneg %p219
      $region58: #{attention_gate.1} parent=55 // pred_check_branch
        %540 = sbr.rel (%p538) target = $region60
      $region59: #{attention_gate.1} parent=55 // pred_region
        %s541 = smul.u32 2, %s27
        %p542 = scmp.lt.s32.totalorder %s26, 1
        %s543 = scalar_select %p542, %s26, 1
        %p544 = scmp.lt.s32.totalorder %s541, 1
        %s545 = scalar_select %p544, %s541, 1
        %s546 = smul.addr %s543, 2
        %s547 = sadd.s32 %s545, %s546
        %s548 = smul.addr %s547, 8
        %s549 = scalar_lea.vmem %s7, %s548
      $region60: #{attention_gate.1} parent=55 // pred_fallthru
        _
    $region56: #{attention_gate.1} parent=5 // pred_fallthru
      _
  $region6: #{attention_gate.1} parent=0 // loop_footer
    %s19 = sadd.s32 1, %s15
  $region7: #{attention_gate.1} parent=0 // loop_footer_branch
    %14 = sbr.rel target = $region3
  $region8: #{attention_gate.1} parent=0 // loop_exit
    _

</llo_original>
